<compile_context>
chip_gen: v7x
topology: tpu7x:2x2x1
jax: 0.10.0
libtpu: 0.0.40
codegen_flags: <defaults>
</compile_context>

<pallas_src>
import jax
import jax.numpy as jnp
from jax.experimental import pallas as pl
from jax.experimental.pallas import tpu as pltpu

FEAT_DIM = 512               # resnet_depth=18 -> resnet_output_dim = 512
FEAT_HALF = FEAT_DIM // 2    # feature columns split across the parallel grid axis


def _round_up(x, m):
    return (x + m - 1) // m * m


def net_kernel(x_ref, wf_ref, wc_ref, o_ref, acc_ref):
    # Grid axes: h = program_id(0) (parallel, 2 feature-column halves),
    #            k = program_id(1) (arbitrary, reduction over flattened input).
    # x_ref  : [B_pad, TK]          bf16 flattened-image K-tile
    # wf_ref : [TK, FEAT_HALF]      bf16 backbone-projection tile (K-tile, half h)
    # wc_ref : [FEAT_HALF, NC_pad]  f32 fc weight half (transposed), lane-padded
    # o_ref  : [B_pad, NC_pad]      f32 partial logits for half h.  Resident
    #                               across the k axis (constant block index) and
    #                               only valid after the last k step -- the k
    #                               axis must stay innermost + "arbitrary".
    # acc_ref: [B_pad, FEAT_HALF]   f32 VMEM feature accumulator
    k = pl.program_id(1)

    @pl.when(k == 0)
    def _():
        acc_ref[...] = jnp.zeros_like(acc_ref)

    # feature_half += x_tile @ wf_tile  (bf16 operands, f32 accumulation on MXU)
    acc_ref[...] += jnp.dot(
        x_ref[...], wf_ref[...], preferred_element_type=jnp.float32
    )

    @pl.when(k == pl.num_programs(1) - 1)
    def _():
        # fc half-matmul in f32 (matches PyTorch f32 nn.Linear closely).
        o_ref[...] = jnp.dot(
            acc_ref[...], wc_ref[...], preferred_element_type=jnp.float32
        )


def make_net_forward(wf, wc, bias, *, tk=4096):
    """Preprocess parameters once; return a jitted forward(x_nchw) callable.

    wf  : [d_in, FEAT_DIM]       synthetic backbone projection weights (f32)
    wc  : [num_class, FEAT_DIM]  nn.Linear weight, PyTorch layout (f32)
    bias: [num_class]            nn.Linear bias (f32)
    """
    d_in = wf.shape[0]
    num_class = wc.shape[0]

    nc_pad = _round_up(num_class, 128)
    tk = min(tk, _round_up(d_in, 128))     # clamp for small d_in
    d_pad = _round_up(d_in, tk)
    num_k = d_pad // tk

    # ---- one-time parameter preprocessing (hoisted out of the call path) ----
    wf_p = jnp.zeros((d_pad, FEAT_DIM), jnp.bfloat16).at[:d_in, :].set(
        wf.astype(jnp.bfloat16))
    wc_p = jnp.zeros((FEAT_DIM, nc_pad), jnp.float32).at[:, :num_class].set(
        wc.T.astype(jnp.float32))
    bias_f = bias.astype(jnp.float32)

    def _forward(x_nchw, wf_p, wc_p, bias_f):
        B = x_nchw.shape[0]
        b_pad = max(_round_up(B, 16), 16)   # bf16 vregs pack 16 sublanes

        x_flat = x_nchw.reshape(B, -1)
        x_p = jnp.zeros((b_pad, d_pad), jnp.bfloat16).at[:B, :d_in].set(
            x_flat.astype(jnp.bfloat16))

        out_p = pl.pallas_call(
            net_kernel,
            out_shape=jax.ShapeDtypeStruct((b_pad, 2 * nc_pad), jnp.float32),
            grid=(2, num_k),  # (feature-half: parallel, K: reduction, innermost)
            in_specs=[
                pl.BlockSpec((b_pad, tk), lambda h, k: (0, k)),          # x K-tile
                pl.BlockSpec((tk, FEAT_HALF), lambda h, k: (k, h)),      # wf tile
                pl.BlockSpec((FEAT_HALF, nc_pad), lambda h, k: (h, 0)),  # wc half
            ],
            out_specs=pl.BlockSpec((b_pad, nc_pad), lambda h, k: (0, h)),
            scratch_shapes=[pltpu.VMEM((b_pad, FEAT_HALF), jnp.float32)],
            compiler_params=pltpu.CompilerParams(
                dimension_semantics=("parallel", "arbitrary"),
            ),
        )(x_p, wf_p, wc_p)

        # Sum the two feature-half partial logits, add bias, drop padding.
        out = out_p[:, :nc_pad] + out_p[:, nc_pad:]
        return out[:B, :num_class] + bias_f

    fwd = jax.jit(_forward)
    return lambda x: fwd(x, wf_p, wc_p, bias_f)


def reference_forward(x_nchw, wf, wc, bias):
    # Plain-JAX reference mirroring the kernel's numerics: the synthetic
    # backbone projection uses bf16 operands with f32 accumulation; the fc
    # layer is f32 end-to-end (matching the PyTorch nn.Linear).
    B = x_nchw.shape[0]
    x = x_nchw.reshape(B, -1).astype(jnp.bfloat16)
    feat = jnp.dot(x, wf.astype(jnp.bfloat16),
                   preferred_element_type=jnp.float32)
    return feat @ wc.T.astype(jnp.float32) + bias.astype(jnp.float32)


if __name__ == "__main__":
    key = jax.random.PRNGKey(0)
    k_x, k_wf, k_wc, k_b = jax.random.split(key, 4)

    B, C, H, W = 2, 4, 16, 16          # small synthetic NCHW image batch
    num_class = 32
    d_in = C * H * W

    x = jax.random.normal(k_x, (B, C, H, W), dtype=jnp.float32)
    # Synthetic deterministic parameters (backbone stand-in + fc).
    wf = jax.random.normal(k_wf, (d_in, FEAT_DIM), dtype=jnp.float32) * 0.02
    # nn.Linear(512, num_class, bias=True): weight [num_class, 512], bias [num_class]
    wc = jax.random.normal(k_wc, (num_class, FEAT_DIM), dtype=jnp.float32) * 0.02
    bias = jax.random.normal(k_b, (num_class,), dtype=jnp.float32) * 0.1

    forward = make_net_forward(wf, wc, bias)   # params preprocessed once here
    out = jax.block_until_ready(forward(x))

    ref = reference_forward(x, wf, wc, bias)
    assert out.shape == (B, num_class)
    assert jnp.allclose(out, ref, atol=1e-2, rtol=1e-2), float(
        jnp.max(jnp.abs(out - ref)))

    print("KERNEL_OK")
</pallas_src>

<mosaic_0001>
module attributes {stable_mosaic.version = 11 : i64} {
  func.func @net_kernel(%arg0: i32, %arg1: i32, %arg2: memref<16x1024xbf16, #tpu.memory_space<vmem>>, %arg3: memref<1024x256xbf16, #tpu.memory_space<vmem>>, %arg4: memref<256x128xf32, #tpu.memory_space<vmem>>, %arg5: memref<16x128xf32, #tpu.memory_space<vmem>>, %arg6: memref<16x256xf32, #tpu.memory_space<vmem>>) attributes {dimension_semantics = [#tpu.dimension_semantics<parallel>, #tpu.dimension_semantics<arbitrary>], iteration_bounds = array<i64: 2, 1>, scalar_prefetch = 0 : i64, scratch_operands = 1 : i64, tpu.core_type = #tpu.core_type<tc>, window_params = [{transform_indices = @transform_0, window_bounds = array<i64: 16, 1024>}, {transform_indices = @transform_1, window_bounds = array<i64: 1024, 256>}, {transform_indices = @transform_2, window_bounds = array<i64: 256, 128>}, {transform_indices = @transform_3, window_bounds = array<i64: 16, 128>}]} {
    %c0_i32 = arith.constant 0 : i32
    %0 = arith.cmpi eq, %arg1, %c0_i32 : i32
    %1 = arith.extui %0 : i1 to i32
    %c0_i32_0 = arith.constant 0 : i32
    %2 = arith.cmpi ne, %1, %c0_i32_0 : i32
    scf.if %2 {
      %cst_10 = arith.constant 0.000000e+00 : f32
      %12 = vector.broadcast %cst_10 : f32 to vector<16x256xf32>
      %c0_11 = arith.constant 0 : index
      %c0_12 = arith.constant 0 : index
      %13 = vector.load %arg6[%c0_11, %c0_12] : memref<16x256xf32, #tpu.memory_space<vmem>>, vector<16x256xf32>
      tpu.vector_store %arg6[%c0_11, %c0_12], %12 {strides = array<i32>} : memref<16x256xf32, #tpu.memory_space<vmem>>, vector<16x256xf32>,
    } else {
    }
    %c0 = arith.constant 0 : index
    %c0_1 = arith.constant 0 : index
    %3 = vector.load %arg6[%c0, %c0_1] : memref<16x256xf32, #tpu.memory_space<vmem>>, vector<16x256xf32>
    %c0_2 = arith.constant 0 : index
    %c0_3 = arith.constant 0 : index
    %4 = vector.load %arg2[%c0_2, %c0_3] : memref<16x1024xbf16, #tpu.memory_space<vmem>>, vector<16x1024xbf16>
    %c0_4 = arith.constant 0 : index
    %c0_5 = arith.constant 0 : index
    %5 = vector.load %arg3[%c0_4, %c0_5] : memref<1024x256xbf16, #tpu.memory_space<vmem>>, vector<1024x256xbf16>
    %cst = arith.constant dense<0.000000e+00> : vector<16x256xf32>
    %6 = tpu.matmul %4, %5, %cst {dimension_numbers = #tpu.dot_dimension_numbers<[1], [0], [0], [1], [0, 0, 1, 1], [], []>} : vector<16x1024xbf16>, vector<1024x256xbf16>, vector<16x256xf32> -> vector<16x256xf32>
    %7 = arith.addf %3, %6 : vector<16x256xf32>
    %c0_6 = arith.constant 0 : index
    %c0_7 = arith.constant 0 : index
    %8 = vector.load %arg6[%c0_6, %c0_7] : memref<16x256xf32, #tpu.memory_space<vmem>>, vector<16x256xf32>
    tpu.vector_store %arg6[%c0_6, %c0_7], %7 {strides = array<i32>} : memref<16x256xf32, #tpu.memory_space<vmem>>, vector<16x256xf32>,
    %c0_i32_8 = arith.constant 0 : i32
    %9 = arith.cmpi eq, %arg1, %c0_i32_8 : i32
    %10 = arith.extui %9 : i1 to i32
    %c0_i32_9 = arith.constant 0 : i32
    %11 = arith.cmpi ne, %10, %c0_i32_9 : i32
    scf.if %11 {
      %c0_10 = arith.constant 0 : index
      %c0_11 = arith.constant 0 : index
      %12 = vector.load %arg6[%c0_10, %c0_11] : memref<16x256xf32, #tpu.memory_space<vmem>>, vector<16x256xf32>
      %c0_12 = arith.constant 0 : index
      %c0_13 = arith.constant 0 : index
      %13 = vector.load %arg4[%c0_12, %c0_13] : memref<256x128xf32, #tpu.memory_space<vmem>>, vector<256x128xf32>
      %cst_14 = arith.constant dense<0.000000e+00> : vector<16x128xf32>
      %14 = tpu.matmul %12, %13, %cst_14 {dimension_numbers = #tpu.dot_dimension_numbers<[1], [0], [0], [1], [0, 0, 1, 1], [], []>} : vector<16x256xf32>, vector<256x128xf32>, vector<16x128xf32> -> vector<16x128xf32>
      %c0_15 = arith.constant 0 : index
      %c0_16 = arith.constant 0 : index
      %15 = vector.load %arg5[%c0_15, %c0_16] : memref<16x128xf32, #tpu.memory_space<vmem>>, vector<16x128xf32>
      tpu.vector_store %arg5[%c0_15, %c0_16], %14 {strides = array<i32>} : memref<16x128xf32, #tpu.memory_space<vmem>>, vector<16x128xf32>,
    } else {
    }
    return
  }
  func.func @transform_0(%arg0: i32, %arg1: i32) -> (i32, i32) {
    %c0_i32 = arith.constant 0 : i32
    %c0_i32_0 = arith.constant 0 : i32
    return %c0_i32, %arg1 : i32, i32
  }
  func.func @transform_1(%arg0: i32, %arg1: i32) -> (i32, i32) {
    %c0_i32 = arith.constant 0 : i32
    return %arg1, %arg0 : i32, i32
  }
  func.func @transform_2(%arg0: i32, %arg1: i32) -> (i32, i32) {
    %c0_i32 = arith.constant 0 : i32
    %c0_i32_0 = arith.constant 0 : i32
    return %arg0, %c0_i32 : i32, i32
  }
  func.func @transform_3(%arg0: i32, %arg1: i32) -> (i32, i32) {
    %c0_i32 = arith.constant 0 : i32
    %c0_i32_0 = arith.constant 0 : i32
    return %c0_i32, %arg0 : i32, i32
  }
}

</mosaic_0001>

<llo_original>
// kernel: _forward.1
$region0: #{_forward.1}
  #allocation0 [shape = 'u32[]', space=smem, size = 0x4, offset = 0x4, fixed_abs, tag = 'smem constant byte address 0x4 - core index']
  #allocation1 [shape = 'u32[144,128]{1,0:T(1,128)}', space=vmem, size = 0x12000, scoped, tag = 'internal scratch']
  #allocation2 [shape = 'f32[16,256]{1,0:T(8,128)}', space=vmem, size = 0x4000, scoped, tag = 'scratch operand']
  %s0 = inlined_call_operand.vmem [shape: bf16[16,1024], index: 0, kind: input, shape index: {}]
  %s1 = inlined_call_operand.hbm [shape: bf16[1024,512], index: 1, kind: input, shape index: {}]
  %s2 = inlined_call_operand.hbm [shape: f32[512,128], index: 2, kind: input, shape index: {}]
  %s3 = inlined_call_operand.vmem [shape: f32[16,256], index: 3, kind: output, shape index: {}]
  %s4 = sld [smem:[#allocation0]]
  $region95: #{_forward.1} parent=0
    _
  %s6 = ssub.s32 1, %s4
  %s7 = scalar_select 0, %s6, %s4
  $region1: #{_forward.1} parent=0
    #allocation3 [shape = 'u8[1048576]{0}', space=vmem, size = 0x100000, scoped, tag = 'input window, operand 1']
    #allocation4 [shape = 's32[2]{0}', space=sflag, size = 0x8, scoped, tag = 'scoped memory for _forward.1']
    #allocation5 [shape = 'u8[262144]{0}', space=vmem, size = 0x40000, scoped, tag = 'input window, operand 2']
    #allocation6 [shape = 's32[2]{0}', space=sflag, size = 0x8, scoped, tag = 'scoped memory for _forward.1']
    #allocation7 [shape = 'u8[16384]{0}', space=vmem, size = 0x4000, scoped, tag = 'output window, operand 0']
    %8 = vsyncpa [#allocation4], 0
    %s9 = scalar_lea.sflag [#allocation4], 1
    %10 = vsyncpa %s9, 0
    %11 = vsyncpa [#allocation6], 0
    %s12 = scalar_lea.sflag [#allocation6], 1
    %13 = vsyncpa %s12, 0
    loop: start=0, step=1, limit=4
    $region2: #{_forward.1} parent=1 // loop_pre_header
      _
    $region3: #{_forward.1} parent=1 // loop_header
      %s15 = sphi 0, %s19
      %p16 = scmp.ge.s32.totalorder %s15, 4
      %s22 = sphi 0, %s34
      %s23 = sphi 0, %s30
      %s24 = sphi 0, %s22
      %s25 = sphi 0, %s23
      %s26 = sphi 0, %s24
      %s27 = sphi 0, %s25
      %s37 = sphi 0, %s39
      %s40 = sphi 0, %s37
      %s41 = sphi 0, %s40
      %s57 = sphi 0, %s41
      %s65 = sphi 0, %s67
      %s68 = sphi 0, %s65
      %s69 = sphi 0, %s68
      %s85 = sphi 0, %s69
      %s91 = sphi 0, %s93
      %s94 = sphi 0, %s91
      %s95 = sphi 0, %s94
      %s111 = sphi 0, %s95
      %s117 = sphi 0, %s119
      %s120 = sphi 0, %s117
      %s121 = sphi 0, %s120
      %s137 = sphi 0, %s121
    $region4: #{_forward.1} parent=1 // loop_header_branch
      %18 = sbr.rel (%p16) target = $region8
    $region5: #{_forward.1} parent=1 // loop_body
      %s20 = ssub.s32 %s15, 1
      %s21 = ssub.s32 %s15, 2
      %s28 = sadd.s32 1, %s23
      %p29 = scmp.ge.s32.totalorder %s28, 1
      %s30 = scalar_select %p29, 0, %s28
      %s31 = sadd.s32 1, %s22
      %s32 = scalar_select %p29, %s31, %s22
      %p33 = scmp.ge.s32.totalorder %s32, 2
      %s34 = scalar_select %p33, 0, %s32
      %s35 = ssub.s32 %s23, %s30
      %p36 = scmp.eq.s32.totalorder %s35, 0
      %s38 = sadd.s32 %s37, 1
      %s39 = scalar_select %p36, %s37, %s38
      %p42 = pneg %p36
      %p43 = scmp.eq.s32.totalorder %s15, 1
      %p44 = por %p42, %p43
      %p45 = scmp.ne.s32.totalorder %s37, %s40
      %p46 = scmp.eq.s32.totalorder %s15, 0
      %p47 = por %p45, %p46
      %p48 = scmp.ne.s32.totalorder %s37, %s40
      %p49 = scmp.eq.s32.totalorder %s20, 1
      %p50 = por %p48, %p49
      %p51 = scmp.ne.s32.totalorder %s40, %s41
      %p52 = scmp.eq.s32.totalorder %s20, 0
      %p53 = por %p51, %p52
      %p54 = scmp.ne.s32.totalorder %s40, %s41
      %p55 = scmp.eq.s32.totalorder %s21, 1
      %p56 = por %p54, %p55
      %p58 = scmp.ne.s32.totalorder %s41, %s57
      %p59 = scmp.eq.s32.totalorder %s21, 0
      %p60 = por %p58, %p59
      %s61 = ssub.s32 %s23, %s30
      %s62 = ssub.s32 %s22, %s34
      %s63 = sor.u32 %s61, %s62
      %p64 = scmp.eq.s32.totalorder %s63, 0
      %s66 = sadd.s32 %s65, 1
      %s67 = scalar_select %p64, %s65, %s66
      %p70 = pneg %p64
      %p71 = scmp.eq.s32.totalorder %s15, 1
      %p72 = por %p70, %p71
      %p73 = scmp.ne.s32.totalorder %s65, %s68
      %p74 = scmp.eq.s32.totalorder %s15, 0
      %p75 = por %p73, %p74
      %p76 = scmp.ne.s32.totalorder %s65, %s68
      %p77 = scmp.eq.s32.totalorder %s20, 1
      %p78 = por %p76, %p77
      %p79 = scmp.ne.s32.totalorder %s68, %s69
      %p80 = scmp.eq.s32.totalorder %s20, 0
      %p81 = por %p79, %p80
      %p82 = scmp.ne.s32.totalorder %s68, %s69
      %p83 = scmp.eq.s32.totalorder %s21, 1
      %p84 = por %p82, %p83
      %p86 = scmp.ne.s32.totalorder %s69, %s85
      %p87 = scmp.eq.s32.totalorder %s21, 0
      %p88 = por %p86, %p87
      %s89 = ssub.s32 %s22, %s34
      %p90 = scmp.eq.s32.totalorder %s89, 0
      %s92 = sadd.s32 %s91, 1
      %s93 = scalar_select %p90, %s91, %s92
      %p96 = pneg %p90
      %p97 = scmp.eq.s32.totalorder %s15, 1
      %p98 = por %p96, %p97
      %p99 = scmp.ne.s32.totalorder %s91, %s94
      %p100 = scmp.eq.s32.totalorder %s15, 0
      %p101 = por %p99, %p100
      %p102 = scmp.ne.s32.totalorder %s91, %s94
      %p103 = scmp.eq.s32.totalorder %s20, 1
      %p104 = por %p102, %p103
      %p105 = scmp.ne.s32.totalorder %s94, %s95
      %p106 = scmp.eq.s32.totalorder %s20, 0
      %p107 = por %p105, %p106
      %p108 = scmp.ne.s32.totalorder %s94, %s95
      %p109 = scmp.eq.s32.totalorder %s21, 1
      %p110 = por %p108, %p109
      %p112 = scmp.ne.s32.totalorder %s95, %s111
      %p113 = scmp.eq.s32.totalorder %s21, 0
      %p114 = por %p112, %p113
      %s115 = ssub.s32 %s22, %s34
      %p116 = scmp.eq.s32.totalorder %s115, 0
      %s118 = sadd.s32 %s117, 1
      %s119 = scalar_select %p116, %s117, %s118
      %p122 = pneg %p116
      %p123 = scmp.eq.s32.totalorder %s15, 1
      %p124 = por %p122, %p123
      %p125 = scmp.ne.s32.totalorder %s117, %s120
      %p126 = scmp.eq.s32.totalorder %s15, 0
      %p127 = por %p125, %p126
      %p128 = scmp.ne.s32.totalorder %s117, %s120
      %p129 = scmp.eq.s32.totalorder %s20, 1
      %p130 = por %p128, %p129
      %p131 = scmp.ne.s32.totalorder %s120, %s121
      %p132 = scmp.eq.s32.totalorder %s20, 0
      %p133 = por %p131, %p132
      %p134 = scmp.ne.s32.totalorder %s120, %s121
      %p135 = scmp.eq.s32.totalorder %s21, 1
      %p136 = por %p134, %p135
      %p138 = scmp.ne.s32.totalorder %s121, %s137
      %p139 = scmp.eq.s32.totalorder %s21, 0
      %p140 = por %p138, %p139
      %p141 = scmp.le.s32.totalorder 1, %s15
      %p142 = scmp.lt.s32.totalorder %s15, 3
      %p143 = pnand %p141, %p142
      %p144 = pneg %p143
      // Predicated region
      $region9: #{_forward.1} parent=5 // pred_check
        _
      $region10: #{_forward.1} parent=5 // pred_check_branch
        %146 = sbr.rel (%p143) target = $region12
      $region11: #{_forward.1} parent=5 // pred_region
        %s147 = ssub.s32 %s15, 1
        // Predicated region
        $region13: #{_forward.1} parent=11 // pred_check
          %p148 = pneg %p53
        $region14: #{_forward.1} parent=11 // pred_check_branch
          %150 = sbr.rel (%p148) target = $region16
        $region15: #{_forward.1} parent=11 // pred_region
          %s151 = smul.u32 8, %s25
          %p152 = scmp.lt.s32.totalorder %s151, 7
          %s153 = scalar_select %p152, %s151, 7
          %s154 = smul.addr %s153, 4
          %s155 = scalar_lea.vmem %s0, %s154
          %s156 = smul.u32 8, %s25
        $region16: #{_forward.1} parent=11 // pred_fallthru
          _
      $region12: #{_forward.1} parent=5 // pred_fallthru
        _
      %p157 = scmp.lt.s32.totalorder %s15, 2
      // Predicated region
      $region17: #{_forward.1} parent=5 // pred_check
        %p158 = pneg %p157
      $region18: #{_forward.1} parent=5 // pred_check_branch
        %160 = sbr.rel (%p158) target = $region20
      $region19: #{_forward.1} parent=5 // pred_region
        // Predicated region
        $region21: #{_forward.1} parent=19 // pred_check
          %p161 = pneg %p75
        $region22: #{_forward.1} parent=19 // pred_check_branch
          %163 = sbr.rel (%p161) target = $region24
        $region23: #{_forward.1} parent=19 // pred_region
          %s164 = sand.u32 %s65, 1
          %s165 = scalar_lea.sflag [#allocation4], %s164
          %s166 = sand.u32 %s65, 1
          %s167 = smul.addr %s166, 1024
          %s168 = scalar_lea.vmem [#allocation3], %s167
          %s169 = smul.u32 128, %s23
          %s170 = smul.u32 2, %s22
          %s172 = ssub.s32 16384, 16384
          %173 = vsyncadd %s165, %s172
          %s174 = smul.addr %s169, 4
          %s175 = sadd.s32 %s170, %s174
          %s176 = smul.addr %s175, 64
          %s177 = scalar_lea.hbm %s1, %s176
          %s178 = sshll.u32 %s168, 4
          %s179 = int_to_ptr.vmem [resolvable:$true] %s178
          %184 = dma.hbm_to_vmem [thread:$0]  %s177, 16384, %s179, %s165, 256, 128, 8
        $region24: #{_forward.1} parent=19 // pred_fallthru
          _
        // Predicated region
        $region25: #{_forward.1} parent=19 // pred_check
          %p185 = pneg %p101
        $region26: #{_forward.1} parent=19 // pred_check_branch
          %187 = sbr.rel (%p185) target = $region28
        $region27: #{_forward.1} parent=19 // pred_region
          %s188 = sand.u32 %s91, 1
          %s189 = scalar_lea.sflag [#allocation6], %s188
          %s190 = sand.u32 %s91, 1
          %s191 = smul.addr %s190, 256
          %s192 = scalar_lea.vmem [#allocation5], %s191
          %s193 = smul.u32 32, %s22
          %s195 = ssub.s32 4096, 4096
          %196 = vsyncadd %s189, %s195
          %s197 = smul.addr %s193, 128
          %s198 = scalar_lea.hbm %s2, %s197
          %s199 = sshll.u32 %s192, 4
          %s200 = int_to_ptr.vmem [resolvable:$true] %s199
          %205 = dma.hbm_to_vmem [thread:$0]  %s198, 4096, %s200, %s189, 128, 128, 8
        $region28: #{_forward.1} parent=19 // pred_fallthru
          _
      $region20: #{_forward.1} parent=5 // pred_fallthru
        _
      %p206 = scmp.le.s32.totalorder 1, %s15
      %p207 = scmp.lt.s32.totalorder %s15, 3
      %p208 = pnand %p206, %p207
      %p209 = pneg %p208
      // Predicated region
      $region29: #{_forward.1} parent=5 // pred_check
        _
      $region30: #{_forward.1} parent=5 // pred_check_branch
        %211 = sbr.rel (%p208) target = $region32
      $region31: #{_forward.1} parent=5 // pred_region
        %s212 = ssub.s32 %s15, 1
        %s213 = sand.u32 %s68, 1
        %s214 = scalar_lea.sflag [#allocation4], %s213
        %s215 = sand.u32 %s68, 1
        %s216 = smul.addr %s215, 1024
        %s217 = scalar_lea.vmem [#allocation3], %s216
        // Predicated region
        $region33: #{_forward.1} parent=31 // pred_check
          %p218 = pneg %p81
        $region34: #{_forward.1} parent=31 // pred_check_branch
          %220 = sbr.rel (%p218) target = $region36
        $region35: #{_forward.1} parent=31 // pred_region
          %221 = dma.done %s214, 16384
        $region36: #{_forward.1} parent=31 // pred_fallthru
          _
        %s222 = sand.u32 %s94, 1
        %s223 = scalar_lea.sflag [#allocation6], %s222
        %s224 = sand.u32 %s94, 1
        %s225 = smul.addr %s224, 256
        %s226 = scalar_lea.vmem [#allocation5], %s225
        // Predicated region
        $region37: #{_forward.1} parent=31 // pred_check
          %p227 = pneg %p107
        $region38: #{_forward.1} parent=31 // pred_check_branch
          %229 = sbr.rel (%p227) target = $region40
        $region39: #{_forward.1} parent=31 // pred_region
          %230 = dma.done %s223, 4096
        $region40: #{_forward.1} parent=31 // pred_fallthru
          _
        %s231 = smul.u32 8, %s25
        %p232 = scmp.lt.s32.totalorder %s231, 7
        %s233 = scalar_select %p232, %s231, 7
        %s234 = smul.addr %s233, 4
        %s235 = scalar_lea.vmem %s0, %s234
        %p236 = pneg %p53
        %p237 = pneg %p50
        %s238 = sand.u32 %s68, 1
        %s239 = scalar_lea.sflag [#allocation4], %s238
        %s240 = sand.u32 %s68, 1
        %s241 = smul.addr %s240, 1024
        %s242 = scalar_lea.vmem [#allocation3], %s241
        %p243 = pneg %p81
        %p244 = pneg %p78
        %s245 = sand.u32 %s94, 1
        %s246 = scalar_lea.sflag [#allocation6], %s245
        %s247 = sand.u32 %s94, 1
        %s248 = smul.addr %s247, 256
        %s249 = scalar_lea.vmem [#allocation5], %s248
        %p250 = pneg %p107
        %p251 = pneg %p104
        %p252 = pneg %p133
        %p253 = pneg %p130
        %s254 = sand.u32 %s120, 1
        %s255 = sand.u32 %s120, 1
        %s256 = smul.addr %s255, 16
        %s257 = scalar_lea.vmem [#allocation7], %s256
        %s258 = smul.u32 8, %s25
        %p259 = scmp.lt.s32.totalorder %s258, 7
        %s260 = scalar_select %p259, %s258, 7
        %s261 = smul.addr %s260, 4
        %s262 = scalar_lea.vmem %s0, %s261
        %s263 = smul.u32 8, %s25
        %s264 = smul.u32 128, %s25
        %s265 = smul.u32 2, %s24
        %s266 = smul.u32 32, %s24
        %p267 = scmp.eq.s32.totalorder %s25, 0
        // Predicated region
        $region41: #{_forward.1} parent=31 // pred_check
          %p268 = pneg %p267
        $region42: #{_forward.1} parent=31 // pred_check_branch
          %270 = sbr.rel (%p268) target = $region44
        $region43: #{_forward.1} parent=31 // pred_region
          %271 = vst [vmem:[#allocation2] sm:$0xff] 0.0
          %272 = vst [vmem:[#allocation2 + $0x8] sm:$0xff] 0.0
          %273 = vst [vmem:[#allocation2 + $0x10] sm:$0xff] 0.0
          %274 = vst [vmem:[#allocation2 + $0x18] sm:$0xff] 0.0
        $region44: #{_forward.1} parent=31 // pred_fallthru
          _
        %v275 = vld [vmem:[#allocation2] sm:$0xff]
        %v276 = vld [vmem:[#allocation2 + $0x8] sm:$0xff]
        %v277 = vld [vmem:[#allocation2 + $0x10] sm:$0xff]
        %v278 = vld [vmem:[#allocation2 + $0x18] sm:$0xff]
        %v279 = vld [vmem:[%s262] sm:$0xff]
        %v280 = vld [vmem:[%s262 + $0x8] sm:$0xff]
        %v281 = vld [vmem:[%s262 + $0x10] sm:$0xff]
        %v282 = vld [vmem:[%s262 + $0x18] sm:$0xff]
        %v283 = vld [vmem:[%s262 + $0x20] sm:$0xff]
        %v284 = vld [vmem:[%s262 + $0x28] sm:$0xff]
        %v285 = vld [vmem:[%s262 + $0x30] sm:$0xff]
        %v286 = vld [vmem:[%s262 + $0x38] sm:$0xff]
        %v287 = vld [vmem:[%s217] sm:$0xff]
        %v288 = vld [vmem:[%s217 + $0x8] sm:$0xff]
        %v289 = vld [vmem:[%s217 + $0x10] sm:$0xff]
        %v290 = vld [vmem:[%s217 + $0x18] sm:$0xff]
        %v291 = vld [vmem:[%s217 + $0x20] sm:$0xff]
        %v292 = vld [vmem:[%s217 + $0x28] sm:$0xff]
        %v293 = vld [vmem:[%s217 + $0x30] sm:$0xff]
        %v294 = vld [vmem:[%s217 + $0x38] sm:$0xff]
        %v295 = vld [vmem:[%s217 + $0x40] sm:$0xff]
        %v296 = vld [vmem:[%s217 + $0x48] sm:$0xff]
        %v297 = vld [vmem:[%s217 + $0x50] sm:$0xff]
        %v298 = vld [vmem:[%s217 + $0x58] sm:$0xff]
        %v299 = vld [vmem:[%s217 + $0x60] sm:$0xff]
        %v300 = vld [vmem:[%s217 + $0x68] sm:$0xff]
        %v301 = vld [vmem:[%s217 + $0x70] sm:$0xff]
        %v302 = vld [vmem:[%s217 + $0x78] sm:$0xff]
        %v303 = vld [vmem:[%s217 + $0x80] sm:$0xff]
        %v304 = vld [vmem:[%s217 + $0x88] sm:$0xff]
        %v305 = vld [vmem:[%s217 + $0x90] sm:$0xff]
        %v306 = vld [vmem:[%s217 + $0x98] sm:$0xff]
        %v307 = vld [vmem:[%s217 + $0xa0] sm:$0xff]
        %v308 = vld [vmem:[%s217 + $0xa8] sm:$0xff]
        %v309 = vld [vmem:[%s217 + $0xb0] sm:$0xff]
        %v310 = vld [vmem:[%s217 + $0xb8] sm:$0xff]
        %v311 = vld [vmem:[%s217 + $0xc0] sm:$0xff]
        %v312 = vld [vmem:[%s217 + $0xc8] sm:$0xff]
        %v313 = vld [vmem:[%s217 + $0xd0] sm:$0xff]
        %v314 = vld [vmem:[%s217 + $0xd8] sm:$0xff]
        %v315 = vld [vmem:[%s217 + $0xe0] sm:$0xff]
        %v316 = vld [vmem:[%s217 + $0xe8] sm:$0xff]
        %v317 = vld [vmem:[%s217 + $0xf0] sm:$0xff]
        %v318 = vld [vmem:[%s217 + $0xf8] sm:$0xff]
        %v319 = vld [vmem:[%s217 + $0x100] sm:$0xff]
        %v320 = vld [vmem:[%s217 + $0x108] sm:$0xff]
        %v321 = vld [vmem:[%s217 + $0x110] sm:$0xff]
        %v322 = vld [vmem:[%s217 + $0x118] sm:$0xff]
        %v323 = vld [vmem:[%s217 + $0x120] sm:$0xff]
        %v324 = vld [vmem:[%s217 + $0x128] sm:$0xff]
        %v325 = vld [vmem:[%s217 + $0x130] sm:$0xff]
        %v326 = vld [vmem:[%s217 + $0x138] sm:$0xff]
        %v327 = vld [vmem:[%s217 + $0x140] sm:$0xff]
        %v328 = vld [vmem:[%s217 + $0x148] sm:$0xff]
        %v329 = vld [vmem:[%s217 + $0x150] sm:$0xff]
        %v330 = vld [vmem:[%s217 + $0x158] sm:$0xff]
        %v331 = vld [vmem:[%s217 + $0x160] sm:$0xff]
        %v332 = vld [vmem:[%s217 + $0x168] sm:$0xff]
        %v333 = vld [vmem:[%s217 + $0x170] sm:$0xff]
        %v334 = vld [vmem:[%s217 + $0x178] sm:$0xff]
        %v335 = vld [vmem:[%s217 + $0x180] sm:$0xff]
        %v336 = vld [vmem:[%s217 + $0x188] sm:$0xff]
        %v337 = vld [vmem:[%s217 + $0x190] sm:$0xff]
        %v338 = vld [vmem:[%s217 + $0x198] sm:$0xff]
        %v339 = vld [vmem:[%s217 + $0x1a0] sm:$0xff]
        %v340 = vld [vmem:[%s217 + $0x1a8] sm:$0xff]
        %v341 = vld [vmem:[%s217 + $0x1b0] sm:$0xff]
        %v342 = vld [vmem:[%s217 + $0x1b8] sm:$0xff]
        %v343 = vld [vmem:[%s217 + $0x1c0] sm:$0xff]
        %v344 = vld [vmem:[%s217 + $0x1c8] sm:$0xff]
        %v345 = vld [vmem:[%s217 + $0x1d0] sm:$0xff]
        %v346 = vld [vmem:[%s217 + $0x1d8] sm:$0xff]
        %v347 = vld [vmem:[%s217 + $0x1e0] sm:$0xff]
        %v348 = vld [vmem:[%s217 + $0x1e8] sm:$0xff]
        %v349 = vld [vmem:[%s217 + $0x1f0] sm:$0xff]
        %v350 = vld [vmem:[%s217 + $0x1f8] sm:$0xff]
        %v351 = vld [vmem:[%s217 + $0x200] sm:$0xff]
        %v352 = vld [vmem:[%s217 + $0x208] sm:$0xff]
        %v353 = vld [vmem:[%s217 + $0x210] sm:$0xff]
        %v354 = vld [vmem:[%s217 + $0x218] sm:$0xff]
        %v355 = vld [vmem:[%s217 + $0x220] sm:$0xff]
        %v356 = vld [vmem:[%s217 + $0x228] sm:$0xff]
        %v357 = vld [vmem:[%s217 + $0x230] sm:$0xff]
        %v358 = vld [vmem:[%s217 + $0x238] sm:$0xff]
        %v359 = vld [vmem:[%s217 + $0x240] sm:$0xff]
        %v360 = vld [vmem:[%s217 + $0x248] sm:$0xff]
        %v361 = vld [vmem:[%s217 + $0x250] sm:$0xff]
        %v362 = vld [vmem:[%s217 + $0x258] sm:$0xff]
        %v363 = vld [vmem:[%s217 + $0x260] sm:$0xff]
        %v364 = vld [vmem:[%s217 + $0x268] sm:$0xff]
        %v365 = vld [vmem:[%s217 + $0x270] sm:$0xff]
        %v366 = vld [vmem:[%s217 + $0x278] sm:$0xff]
        %v367 = vld [vmem:[%s217 + $0x280] sm:$0xff]
        %v368 = vld [vmem:[%s217 + $0x288] sm:$0xff]
        %v369 = vld [vmem:[%s217 + $0x290] sm:$0xff]
        %v370 = vld [vmem:[%s217 + $0x298] sm:$0xff]
        %v371 = vld [vmem:[%s217 + $0x2a0] sm:$0xff]
        %v372 = vld [vmem:[%s217 + $0x2a8] sm:$0xff]
        %v373 = vld [vmem:[%s217 + $0x2b0] sm:$0xff]
        %v374 = vld [vmem:[%s217 + $0x2b8] sm:$0xff]
        %v375 = vld [vmem:[%s217 + $0x2c0] sm:$0xff]
        %v376 = vld [vmem:[%s217 + $0x2c8] sm:$0xff]
        %v377 = vld [vmem:[%s217 + $0x2d0] sm:$0xff]
        %v378 = vld [vmem:[%s217 + $0x2d8] sm:$0xff]
        %v379 = vld [vmem:[%s217 + $0x2e0] sm:$0xff]
        %v380 = vld [vmem:[%s217 + $0x2e8] sm:$0xff]
        %v381 = vld [vmem:[%s217 + $0x2f0] sm:$0xff]
        %v382 = vld [vmem:[%s217 + $0x2f8] sm:$0xff]
        %v383 = vld [vmem:[%s217 + $0x300] sm:$0xff]
        %v384 = vld [vmem:[%s217 + $0x308] sm:$0xff]
        %v385 = vld [vmem:[%s217 + $0x310] sm:$0xff]
        %v386 = vld [vmem:[%s217 + $0x318] sm:$0xff]
        %v387 = vld [vmem:[%s217 + $0x320] sm:$0xff]
        %v388 = vld [vmem:[%s217 + $0x328] sm:$0xff]
        %v389 = vld [vmem:[%s217 + $0x330] sm:$0xff]
        %v390 = vld [vmem:[%s217 + $0x338] sm:$0xff]
        %v391 = vld [vmem:[%s217 + $0x340] sm:$0xff]
        %v392 = vld [vmem:[%s217 + $0x348] sm:$0xff]
        %v393 = vld [vmem:[%s217 + $0x350] sm:$0xff]
        %v394 = vld [vmem:[%s217 + $0x358] sm:$0xff]
        %v395 = vld [vmem:[%s217 + $0x360] sm:$0xff]
        %v396 = vld [vmem:[%s217 + $0x368] sm:$0xff]
        %v397 = vld [vmem:[%s217 + $0x370] sm:$0xff]
        %v398 = vld [vmem:[%s217 + $0x378] sm:$0xff]
        %v399 = vld [vmem:[%s217 + $0x380] sm:$0xff]
        %v400 = vld [vmem:[%s217 + $0x388] sm:$0xff]
        %v401 = vld [vmem:[%s217 + $0x390] sm:$0xff]
        %v402 = vld [vmem:[%s217 + $0x398] sm:$0xff]
        %v403 = vld [vmem:[%s217 + $0x3a0] sm:$0xff]
        %v404 = vld [vmem:[%s217 + $0x3a8] sm:$0xff]
        %v405 = vld [vmem:[%s217 + $0x3b0] sm:$0xff]
        %v406 = vld [vmem:[%s217 + $0x3b8] sm:$0xff]
        %v407 = vld [vmem:[%s217 + $0x3c0] sm:$0xff]
        %v408 = vld [vmem:[%s217 + $0x3c8] sm:$0xff]
        %v409 = vld [vmem:[%s217 + $0x3d0] sm:$0xff]
        %v410 = vld [vmem:[%s217 + $0x3d8] sm:$0xff]
        %v411 = vld [vmem:[%s217 + $0x3e0] sm:$0xff]
        %v412 = vld [vmem:[%s217 + $0x3e8] sm:$0xff]
        %v413 = vld [vmem:[%s217 + $0x3f0] sm:$0xff]
        %v414 = vld [vmem:[%s217 + $0x3f8] sm:$0xff]
        %v423 = vunpack.c.l.b16 %v279
        %v424 = vunpack.c.h.b16 %v279
        %v425 = vunpack.c.l.b16 %v280
        %v426 = vunpack.c.h.b16 %v280
        %v427 = vunpack.c.l.b16 %v281
        %v428 = vunpack.c.h.b16 %v281
        %v429 = vunpack.c.l.b16 %v282
        %v430 = vunpack.c.h.b16 %v282
        %v431 = vunpack.c.l.b16 %v283
        %v432 = vunpack.c.h.b16 %v283
        %v433 = vunpack.c.l.b16 %v284
        %v434 = vunpack.c.h.b16 %v284
        %v435 = vunpack.c.l.b16 %v285
        %v436 = vunpack.c.h.b16 %v285
        %v437 = vunpack.c.l.b16 %v286
        %v438 = vunpack.c.h.b16 %v286
        %v439 = vpack.c.b16 %v431, %v423
        %v440 = vpack.c.b16 %v432, %v424
        %v441 = vpack.c.b16 %v433, %v425
        %v442 = vpack.c.b16 %v434, %v426
        %v443 = vpack.c.b16 %v435, %v427
        %v444 = vpack.c.b16 %v436, %v428
        %v445 = vpack.c.b16 %v437, %v429
        %v446 = vpack.c.b16 %v438, %v430
        %v583 = vunpack.c.l.b16 %v287
        %v584 = vunpack.c.h.b16 %v287
        %v585 = vunpack.c.l.b16 %v288
        %v586 = vunpack.c.h.b16 %v288
        %v587 = vunpack.c.l.b16 %v289
        %v588 = vunpack.c.h.b16 %v289
        %v589 = vunpack.c.l.b16 %v290
        %v590 = vunpack.c.h.b16 %v290
        %v591 = vunpack.c.l.b16 %v291
        %v592 = vunpack.c.h.b16 %v291
        %v593 = vunpack.c.l.b16 %v292
        %v594 = vunpack.c.h.b16 %v292
        %v595 = vunpack.c.l.b16 %v293
        %v596 = vunpack.c.h.b16 %v293
        %v597 = vunpack.c.l.b16 %v294
        %v598 = vunpack.c.h.b16 %v294
        %v599 = vunpack.c.l.b16 %v295
        %v600 = vunpack.c.h.b16 %v295
        %v601 = vunpack.c.l.b16 %v296
        %v602 = vunpack.c.h.b16 %v296
        %v603 = vunpack.c.l.b16 %v297
        %v604 = vunpack.c.h.b16 %v297
        %v605 = vunpack.c.l.b16 %v298
        %v606 = vunpack.c.h.b16 %v298
        %v607 = vunpack.c.l.b16 %v299
        %v608 = vunpack.c.h.b16 %v299
        %v609 = vunpack.c.l.b16 %v300
        %v610 = vunpack.c.h.b16 %v300
        %v611 = vunpack.c.l.b16 %v301
        %v612 = vunpack.c.h.b16 %v301
        %v613 = vunpack.c.l.b16 %v302
        %v614 = vunpack.c.h.b16 %v302
        %v615 = vunpack.c.l.b16 %v303
        %v616 = vunpack.c.h.b16 %v303
        %v617 = vunpack.c.l.b16 %v304
        %v618 = vunpack.c.h.b16 %v304
        %v619 = vunpack.c.l.b16 %v305
        %v620 = vunpack.c.h.b16 %v305
        %v621 = vunpack.c.l.b16 %v306
        %v622 = vunpack.c.h.b16 %v306
        %v623 = vunpack.c.l.b16 %v307
        %v624 = vunpack.c.h.b16 %v307
        %v625 = vunpack.c.l.b16 %v308
        %v626 = vunpack.c.h.b16 %v308
        %v627 = vunpack.c.l.b16 %v309
        %v628 = vunpack.c.h.b16 %v309
        %v629 = vunpack.c.l.b16 %v310
        %v630 = vunpack.c.h.b16 %v310
        %v631 = vunpack.c.l.b16 %v311
        %v632 = vunpack.c.h.b16 %v311
        %v633 = vunpack.c.l.b16 %v312
        %v634 = vunpack.c.h.b16 %v312
        %v635 = vunpack.c.l.b16 %v313
        %v636 = vunpack.c.h.b16 %v313
        %v637 = vunpack.c.l.b16 %v314
        %v638 = vunpack.c.h.b16 %v314
        %v639 = vunpack.c.l.b16 %v315
        %v640 = vunpack.c.h.b16 %v315
        %v641 = vunpack.c.l.b16 %v316
        %v642 = vunpack.c.h.b16 %v316
        %v643 = vunpack.c.l.b16 %v317
        %v644 = vunpack.c.h.b16 %v317
        %v645 = vunpack.c.l.b16 %v318
        %v646 = vunpack.c.h.b16 %v318
        %v647 = vunpack.c.l.b16 %v319
        %v648 = vunpack.c.h.b16 %v319
        %v649 = vunpack.c.l.b16 %v320
        %v650 = vunpack.c.h.b16 %v320
        %v651 = vunpack.c.l.b16 %v321
        %v652 = vunpack.c.h.b16 %v321
        %v653 = vunpack.c.l.b16 %v322
        %v654 = vunpack.c.h.b16 %v322
        %v655 = vunpack.c.l.b16 %v323
        %v656 = vunpack.c.h.b16 %v323
        %v657 = vunpack.c.l.b16 %v324
        %v658 = vunpack.c.h.b16 %v324
        %v659 = vunpack.c.l.b16 %v325
        %v660 = vunpack.c.h.b16 %v325
        %v661 = vunpack.c.l.b16 %v326
        %v662 = vunpack.c.h.b16 %v326
        %v663 = vunpack.c.l.b16 %v327
        %v664 = vunpack.c.h.b16 %v327
        %v665 = vunpack.c.l.b16 %v328
        %v666 = vunpack.c.h.b16 %v328
        %v667 = vunpack.c.l.b16 %v329
        %v668 = vunpack.c.h.b16 %v329
        %v669 = vunpack.c.l.b16 %v330
        %v670 = vunpack.c.h.b16 %v330
        %v671 = vunpack.c.l.b16 %v331
        %v672 = vunpack.c.h.b16 %v331
        %v673 = vunpack.c.l.b16 %v332
        %v674 = vunpack.c.h.b16 %v332
        %v675 = vunpack.c.l.b16 %v333
        %v676 = vunpack.c.h.b16 %v333
        %v677 = vunpack.c.l.b16 %v334
        %v678 = vunpack.c.h.b16 %v334
        %v679 = vunpack.c.l.b16 %v335
        %v680 = vunpack.c.h.b16 %v335
        %v681 = vunpack.c.l.b16 %v336
        %v682 = vunpack.c.h.b16 %v336
        %v683 = vunpack.c.l.b16 %v337
        %v684 = vunpack.c.h.b16 %v337
        %v685 = vunpack.c.l.b16 %v338
        %v686 = vunpack.c.h.b16 %v338
        %v687 = vunpack.c.l.b16 %v339
        %v688 = vunpack.c.h.b16 %v339
        %v689 = vunpack.c.l.b16 %v340
        %v690 = vunpack.c.h.b16 %v340
        %v691 = vunpack.c.l.b16 %v341
        %v692 = vunpack.c.h.b16 %v341
        %v693 = vunpack.c.l.b16 %v342
        %v694 = vunpack.c.h.b16 %v342
        %v695 = vunpack.c.l.b16 %v343
        %v696 = vunpack.c.h.b16 %v343
        %v697 = vunpack.c.l.b16 %v344
        %v698 = vunpack.c.h.b16 %v344
        %v699 = vunpack.c.l.b16 %v345
        %v700 = vunpack.c.h.b16 %v345
        %v701 = vunpack.c.l.b16 %v346
        %v702 = vunpack.c.h.b16 %v346
        %v703 = vunpack.c.l.b16 %v347
        %v704 = vunpack.c.h.b16 %v347
        %v705 = vunpack.c.l.b16 %v348
        %v706 = vunpack.c.h.b16 %v348
        %v707 = vunpack.c.l.b16 %v349
        %v708 = vunpack.c.h.b16 %v349
        %v709 = vunpack.c.l.b16 %v350
        %v710 = vunpack.c.h.b16 %v350
        %v711 = vunpack.c.l.b16 %v351
        %v712 = vunpack.c.h.b16 %v351
        %v713 = vunpack.c.l.b16 %v352
        %v714 = vunpack.c.h.b16 %v352
        %v715 = vunpack.c.l.b16 %v353
        %v716 = vunpack.c.h.b16 %v353
        %v717 = vunpack.c.l.b16 %v354
        %v718 = vunpack.c.h.b16 %v354
        %v719 = vunpack.c.l.b16 %v355
        %v720 = vunpack.c.h.b16 %v355
        %v721 = vunpack.c.l.b16 %v356
        %v722 = vunpack.c.h.b16 %v356
        %v723 = vunpack.c.l.b16 %v357
        %v724 = vunpack.c.h.b16 %v357
        %v725 = vunpack.c.l.b16 %v358
        %v726 = vunpack.c.h.b16 %v358
        %v727 = vunpack.c.l.b16 %v359
        %v728 = vunpack.c.h.b16 %v359
        %v729 = vunpack.c.l.b16 %v360
        %v730 = vunpack.c.h.b16 %v360
        %v731 = vunpack.c.l.b16 %v361
        %v732 = vunpack.c.h.b16 %v361
        %v733 = vunpack.c.l.b16 %v362
        %v734 = vunpack.c.h.b16 %v362
        %v735 = vunpack.c.l.b16 %v363
        %v736 = vunpack.c.h.b16 %v363
        %v737 = vunpack.c.l.b16 %v364
        %v738 = vunpack.c.h.b16 %v364
        %v739 = vunpack.c.l.b16 %v365
        %v740 = vunpack.c.h.b16 %v365
        %v741 = vunpack.c.l.b16 %v366
        %v742 = vunpack.c.h.b16 %v366
        %v743 = vunpack.c.l.b16 %v367
        %v744 = vunpack.c.h.b16 %v367
        %v745 = vunpack.c.l.b16 %v368
        %v746 = vunpack.c.h.b16 %v368
        %v747 = vunpack.c.l.b16 %v369
        %v748 = vunpack.c.h.b16 %v369
        %v749 = vunpack.c.l.b16 %v370
        %v750 = vunpack.c.h.b16 %v370
        %v751 = vunpack.c.l.b16 %v371
        %v752 = vunpack.c.h.b16 %v371
        %v753 = vunpack.c.l.b16 %v372
        %v754 = vunpack.c.h.b16 %v372
        %v755 = vunpack.c.l.b16 %v373
        %v756 = vunpack.c.h.b16 %v373
        %v757 = vunpack.c.l.b16 %v374
        %v758 = vunpack.c.h.b16 %v374
        %v759 = vunpack.c.l.b16 %v375
        %v760 = vunpack.c.h.b16 %v375
        %v761 = vunpack.c.l.b16 %v376
        %v762 = vunpack.c.h.b16 %v376
        %v763 = vunpack.c.l.b16 %v377
        %v764 = vunpack.c.h.b16 %v377
        %v765 = vunpack.c.l.b16 %v378
        %v766 = vunpack.c.h.b16 %v378
        %v767 = vunpack.c.l.b16 %v379
        %v768 = vunpack.c.h.b16 %v379
        %v769 = vunpack.c.l.b16 %v380
        %v770 = vunpack.c.h.b16 %v380
        %v771 = vunpack.c.l.b16 %v381
        %v772 = vunpack.c.h.b16 %v381
        %v773 = vunpack.c.l.b16 %v382
        %v774 = vunpack.c.h.b16 %v382
        %v775 = vunpack.c.l.b16 %v383
        %v776 = vunpack.c.h.b16 %v383
        %v777 = vunpack.c.l.b16 %v384
        %v778 = vunpack.c.h.b16 %v384
        %v779 = vunpack.c.l.b16 %v385
        %v780 = vunpack.c.h.b16 %v385
        %v781 = vunpack.c.l.b16 %v386
        %v782 = vunpack.c.h.b16 %v386
        %v783 = vunpack.c.l.b16 %v387
        %v784 = vunpack.c.h.b16 %v387
        %v785 = vunpack.c.l.b16 %v388
        %v786 = vunpack.c.h.b16 %v388
        %v787 = vunpack.c.l.b16 %v389
        %v788 = vunpack.c.h.b16 %v389
        %v789 = vunpack.c.l.b16 %v390
        %v790 = vunpack.c.h.b16 %v390
        %v791 = vunpack.c.l.b16 %v391
        %v792 = vunpack.c.h.b16 %v391
        %v793 = vunpack.c.l.b16 %v392
        %v794 = vunpack.c.h.b16 %v392
        %v795 = vunpack.c.l.b16 %v393
        %v796 = vunpack.c.h.b16 %v393
        %v797 = vunpack.c.l.b16 %v394
        %v798 = vunpack.c.h.b16 %v394
        %v799 = vunpack.c.l.b16 %v395
        %v800 = vunpack.c.h.b16 %v395
        %v801 = vunpack.c.l.b16 %v396
        %v802 = vunpack.c.h.b16 %v396
        %v803 = vunpack.c.l.b16 %v397
        %v804 = vunpack.c.h.b16 %v397
        %v805 = vunpack.c.l.b16 %v398
        %v806 = vunpack.c.h.b16 %v398
        %v807 = vunpack.c.l.b16 %v399
        %v808 = vunpack.c.h.b16 %v399
        %v809 = vunpack.c.l.b16 %v400
        %v810 = vunpack.c.h.b16 %v400
        %v811 = vunpack.c.l.b16 %v401
        %v812 = vunpack.c.h.b16 %v401
        %v813 = vunpack.c.l.b16 %v402
        %v814 = vunpack.c.h.b16 %v402
        %v815 = vunpack.c.l.b16 %v403
        %v816 = vunpack.c.h.b16 %v403
        %v817 = vunpack.c.l.b16 %v404
        %v818 = vunpack.c.h.b16 %v404
        %v819 = vunpack.c.l.b16 %v405
        %v820 = vunpack.c.h.b16 %v405
        %v821 = vunpack.c.l.b16 %v406
        %v822 = vunpack.c.h.b16 %v406
        %v823 = vunpack.c.l.b16 %v407
        %v824 = vunpack.c.h.b16 %v407
        %v825 = vunpack.c.l.b16 %v408
        %v826 = vunpack.c.h.b16 %v408
        %v827 = vunpack.c.l.b16 %v409
        %v828 = vunpack.c.h.b16 %v409
        %v829 = vunpack.c.l.b16 %v410
        %v830 = vunpack.c.h.b16 %v410
        %v831 = vunpack.c.l.b16 %v411
        %v832 = vunpack.c.h.b16 %v411
        %v833 = vunpack.c.l.b16 %v412
        %v834 = vunpack.c.h.b16 %v412
        %v835 = vunpack.c.l.b16 %v413
        %v836 = vunpack.c.h.b16 %v413
        %v837 = vunpack.c.l.b16 %v414
        %v838 = vunpack.c.h.b16 %v414
        %v839 = vpack.c.b16 %v585, %v583
        %v840 = vpack.c.b16 %v586, %v584
        %v841 = vpack.c.b16 %v589, %v587
        %v842 = vpack.c.b16 %v590, %v588
        %v843 = vpack.c.b16 %v593, %v591
        %v844 = vpack.c.b16 %v594, %v592
        %v845 = vpack.c.b16 %v597, %v595
        %v846 = vpack.c.b16 %v598, %v596
        %v847 = vpack.c.b16 %v601, %v599
        %v848 = vpack.c.b16 %v602, %v600
        %v849 = vpack.c.b16 %v605, %v603
        %v850 = vpack.c.b16 %v606, %v604
        %v851 = vpack.c.b16 %v609, %v607
        %v852 = vpack.c.b16 %v610, %v608
        %v853 = vpack.c.b16 %v613, %v611
        %v854 = vpack.c.b16 %v614, %v612
        %v855 = vpack.c.b16 %v617, %v615
        %v856 = vpack.c.b16 %v618, %v616
        %v857 = vpack.c.b16 %v621, %v619
        %v858 = vpack.c.b16 %v622, %v620
        %v859 = vpack.c.b16 %v625, %v623
        %v860 = vpack.c.b16 %v626, %v624
        %v861 = vpack.c.b16 %v629, %v627
        %v862 = vpack.c.b16 %v630, %v628
        %v863 = vpack.c.b16 %v633, %v631
        %v864 = vpack.c.b16 %v634, %v632
        %v865 = vpack.c.b16 %v637, %v635
        %v866 = vpack.c.b16 %v638, %v636
        %v867 = vpack.c.b16 %v641, %v639
        %v868 = vpack.c.b16 %v642, %v640
        %v869 = vpack.c.b16 %v645, %v643
        %v870 = vpack.c.b16 %v646, %v644
        %v871 = vpack.c.b16 %v649, %v647
        %v872 = vpack.c.b16 %v650, %v648
        %v873 = vpack.c.b16 %v653, %v651
        %v874 = vpack.c.b16 %v654, %v652
        %v875 = vpack.c.b16 %v657, %v655
        %v876 = vpack.c.b16 %v658, %v656
        %v877 = vpack.c.b16 %v661, %v659
        %v878 = vpack.c.b16 %v662, %v660
        %v879 = vpack.c.b16 %v665, %v663
        %v880 = vpack.c.b16 %v666, %v664
        %v881 = vpack.c.b16 %v669, %v667
        %v882 = vpack.c.b16 %v670, %v668
        %v883 = vpack.c.b16 %v673, %v671
        %v884 = vpack.c.b16 %v674, %v672
        %v885 = vpack.c.b16 %v677, %v675
        %v886 = vpack.c.b16 %v678, %v676
        %v887 = vpack.c.b16 %v681, %v679
        %v888 = vpack.c.b16 %v682, %v680
        %v889 = vpack.c.b16 %v685, %v683
        %v890 = vpack.c.b16 %v686, %v684
        %v891 = vpack.c.b16 %v689, %v687
        %v892 = vpack.c.b16 %v690, %v688
        %v893 = vpack.c.b16 %v693, %v691
        %v894 = vpack.c.b16 %v694, %v692
        %v895 = vpack.c.b16 %v697, %v695
        %v896 = vpack.c.b16 %v698, %v696
        %v897 = vpack.c.b16 %v701, %v699
        %v898 = vpack.c.b16 %v702, %v700
        %v899 = vpack.c.b16 %v705, %v703
        %v900 = vpack.c.b16 %v706, %v704
        %v901 = vpack.c.b16 %v709, %v707
        %v902 = vpack.c.b16 %v710, %v708
        %v903 = vpack.c.b16 %v713, %v711
        %v904 = vpack.c.b16 %v714, %v712
        %v905 = vpack.c.b16 %v717, %v715
        %v906 = vpack.c.b16 %v718, %v716
        %v907 = vpack.c.b16 %v721, %v719
        %v908 = vpack.c.b16 %v722, %v720
        %v909 = vpack.c.b16 %v725, %v723
        %v910 = vpack.c.b16 %v726, %v724
        %v911 = vpack.c.b16 %v729, %v727
        %v912 = vpack.c.b16 %v730, %v728
        %v913 = vpack.c.b16 %v733, %v731
        %v914 = vpack.c.b16 %v734, %v732
        %v915 = vpack.c.b16 %v737, %v735
        %v916 = vpack.c.b16 %v738, %v736
        %v917 = vpack.c.b16 %v741, %v739
        %v918 = vpack.c.b16 %v742, %v740
        %v919 = vpack.c.b16 %v745, %v743
        %v920 = vpack.c.b16 %v746, %v744
        %v921 = vpack.c.b16 %v749, %v747
        %v922 = vpack.c.b16 %v750, %v748
        %v923 = vpack.c.b16 %v753, %v751
        %v924 = vpack.c.b16 %v754, %v752
        %v925 = vpack.c.b16 %v757, %v755
        %v926 = vpack.c.b16 %v758, %v756
        %v927 = vpack.c.b16 %v761, %v759
        %v928 = vpack.c.b16 %v762, %v760
        %v929 = vpack.c.b16 %v765, %v763
        %v930 = vpack.c.b16 %v766, %v764
        %v931 = vpack.c.b16 %v769, %v767
        %v932 = vpack.c.b16 %v770, %v768
        %v933 = vpack.c.b16 %v773, %v771
        %v934 = vpack.c.b16 %v774, %v772
        %v935 = vpack.c.b16 %v777, %v775
        %v936 = vpack.c.b16 %v778, %v776
        %v937 = vpack.c.b16 %v781, %v779
        %v938 = vpack.c.b16 %v782, %v780
        %v939 = vpack.c.b16 %v785, %v783
        %v940 = vpack.c.b16 %v786, %v784
        %v941 = vpack.c.b16 %v789, %v787
        %v942 = vpack.c.b16 %v790, %v788
        %v943 = vpack.c.b16 %v793, %v791
        %v944 = vpack.c.b16 %v794, %v792
        %v945 = vpack.c.b16 %v797, %v795
        %v946 = vpack.c.b16 %v798, %v796
        %v947 = vpack.c.b16 %v801, %v799
        %v948 = vpack.c.b16 %v802, %v800
        %v949 = vpack.c.b16 %v805, %v803
        %v950 = vpack.c.b16 %v806, %v804
        %v951 = vpack.c.b16 %v809, %v807
        %v952 = vpack.c.b16 %v810, %v808
        %v953 = vpack.c.b16 %v813, %v811
        %v954 = vpack.c.b16 %v814, %v812
        %v955 = vpack.c.b16 %v817, %v815
        %v956 = vpack.c.b16 %v818, %v816
        %v957 = vpack.c.b16 %v821, %v819
        %v958 = vpack.c.b16 %v822, %v820
        %v959 = vpack.c.b16 %v825, %v823
        %v960 = vpack.c.b16 %v826, %v824
        %v961 = vpack.c.b16 %v829, %v827
        %v962 = vpack.c.b16 %v830, %v828
        %v963 = vpack.c.b16 %v833, %v831
        %v964 = vpack.c.b16 %v834, %v832
        %v965 = vpack.c.b16 %v837, %v835
        %v966 = vpack.c.b16 %v838, %v836
        %1095 = vmatprep.subr.bf16.mxu0 %v840
        %1096 = vmatpush1.bf16.msra.mxu0 %v839
        %1097 = vmatprep.subr.bf16.mxu0 %v842
        %1098 = vmatpush1.bf16.msra.mxu0 %v841
        %1099 = vmatprep.subr.bf16.mxu0 %v844
        %1100 = vmatpush1.bf16.msra.mxu0 %v843
        %1101 = vmatprep.subr.bf16.mxu0 %v846
        %1102 = vmatpush1.bf16.msra.mxu0 %v845
        %1103 = vmatprep.subr.bf16.mxu0 %v848
        %1104 = vmatpush1.bf16.msra.mxu0 %v847
        %1105 = vmatprep.subr.bf16.mxu0 %v850
        %1106 = vmatpush1.bf16.msra.mxu0 %v849
        %1107 = vmatprep.subr.bf16.mxu0 %v852
        %1108 = vmatpush1.bf16.msra.mxu0 %v851
        %1109 = vmatprep.subr.bf16.mxu0 %v854
        %1110 = vmatpush1.bf16.msra.mxu0 %v853
        %1111 = vmatprep.subr.bf16.mxu0 %v856
        %1112 = vmatpush1.bf16.msra.mxu0 %v855
        %1113 = vmatprep.subr.bf16.mxu0 %v858
        %1114 = vmatpush1.bf16.msra.mxu0 %v857
        %1115 = vmatprep.subr.bf16.mxu0 %v860
        %1116 = vmatpush1.bf16.msra.mxu0 %v859
        %1117 = vmatprep.subr.bf16.mxu0 %v862
        %1118 = vmatpush1.bf16.msra.mxu0 %v861
        %1119 = vmatprep.subr.bf16.mxu0 %v864
        %1120 = vmatpush1.bf16.msra.mxu0 %v863
        %1121 = vmatprep.subr.bf16.mxu0 %v866
        %1122 = vmatpush1.bf16.msra.mxu0 %v865
        %1123 = vmatprep.subr.bf16.mxu0 %v868
        %1124 = vmatpush1.bf16.msra.mxu0 %v867
        %1125 = vmatprep.subr.bf16.mxu0 %v870
        %1126 = vmatpush1.bf16.msra.mxu0 %v869
        %1127 = vmatprep.mubr.bf16.mxu0 %v440
        %1128 = vmatmul.mubr.bf16.gmra.mrb[0].mxu0 %v439
        %v1129 = vpop.f32.mrb[0].mxu0
        %v1130 = vadd.f32 0.0, %v1129
        %v1131 = vpop.f32.mrb[0].mxu0
        %v1132 = vadd.f32 0.0, %v1131
        %v1133 = vpop.f32.mrb[0].mxu0
        %v1134 = vadd.f32 0.0, %v1133
        %v1135 = vpop.f32.mrb[0].mxu0
        %v1136 = vadd.f32 0.0, %v1135
        %1137 = vdwg.mxu0
        %1138 = vmatprep.subr.bf16.mxu0 %v872
        %1139 = vmatpush1.bf16.msra.mxu0 %v871
        %1140 = vmatprep.subr.bf16.mxu0 %v874
        %1141 = vmatpush1.bf16.msra.mxu0 %v873
        %1142 = vmatprep.subr.bf16.mxu0 %v876
        %1143 = vmatpush1.bf16.msra.mxu0 %v875
        %1144 = vmatprep.subr.bf16.mxu0 %v878
        %1145 = vmatpush1.bf16.msra.mxu0 %v877
        %1146 = vmatprep.subr.bf16.mxu0 %v880
        %1147 = vmatpush1.bf16.msra.mxu0 %v879
        %1148 = vmatprep.subr.bf16.mxu0 %v882
        %1149 = vmatpush1.bf16.msra.mxu0 %v881
        %1150 = vmatprep.subr.bf16.mxu0 %v884
        %1151 = vmatpush1.bf16.msra.mxu0 %v883
        %1152 = vmatprep.subr.bf16.mxu0 %v886
        %1153 = vmatpush1.bf16.msra.mxu0 %v885
        %1154 = vmatprep.subr.bf16.mxu0 %v888
        %1155 = vmatpush1.bf16.msra.mxu0 %v887
        %1156 = vmatprep.subr.bf16.mxu0 %v890
        %1157 = vmatpush1.bf16.msra.mxu0 %v889
        %1158 = vmatprep.subr.bf16.mxu0 %v892
        %1159 = vmatpush1.bf16.msra.mxu0 %v891
        %1160 = vmatprep.subr.bf16.mxu0 %v894
        %1161 = vmatpush1.bf16.msra.mxu0 %v893
        %1162 = vmatprep.subr.bf16.mxu0 %v896
        %1163 = vmatpush1.bf16.msra.mxu0 %v895
        %1164 = vmatprep.subr.bf16.mxu0 %v898
        %1165 = vmatpush1.bf16.msra.mxu0 %v897
        %1166 = vmatprep.subr.bf16.mxu0 %v900
        %1167 = vmatpush1.bf16.msra.mxu0 %v899
        %1168 = vmatprep.subr.bf16.mxu0 %v902
        %1169 = vmatpush1.bf16.msra.mxu0 %v901
        %1170 = vmatprep.mubr.bf16.mxu0 %v442
        %1171 = vmatmul.mubr.bf16.gmra.mrb[0].mxu0 %v441
        %v1172 = vpop.f32.mrb[0].mxu0
        %v1173 = vadd.f32 %v1130, %v1172
        %v1174 = vpop.f32.mrb[0].mxu0
        %v1175 = vadd.f32 %v1132, %v1174
        %v1176 = vpop.f32.mrb[0].mxu0
        %v1177 = vadd.f32 %v1134, %v1176
        %v1178 = vpop.f32.mrb[0].mxu0
        %v1179 = vadd.f32 %v1136, %v1178
        %1180 = vdwg.mxu0
        %1181 = vmatprep.subr.bf16.mxu0 %v904
        %1182 = vmatpush1.bf16.msra.mxu0 %v903
        %1183 = vmatprep.subr.bf16.mxu0 %v906
        %1184 = vmatpush1.bf16.msra.mxu0 %v905
        %1185 = vmatprep.subr.bf16.mxu0 %v908
        %1186 = vmatpush1.bf16.msra.mxu0 %v907
        %1187 = vmatprep.subr.bf16.mxu0 %v910
        %1188 = vmatpush1.bf16.msra.mxu0 %v909
        %1189 = vmatprep.subr.bf16.mxu0 %v912
        %1190 = vmatpush1.bf16.msra.mxu0 %v911
        %1191 = vmatprep.subr.bf16.mxu0 %v914
        %1192 = vmatpush1.bf16.msra.mxu0 %v913
        %1193 = vmatprep.subr.bf16.mxu0 %v916
        %1194 = vmatpush1.bf16.msra.mxu0 %v915
        %1195 = vmatprep.subr.bf16.mxu0 %v918
        %1196 = vmatpush1.bf16.msra.mxu0 %v917
        %1197 = vmatprep.subr.bf16.mxu0 %v920
        %1198 = vmatpush1.bf16.msra.mxu0 %v919
        %1199 = vmatprep.subr.bf16.mxu0 %v922
        %1200 = vmatpush1.bf16.msra.mxu0 %v921
        %1201 = vmatprep.subr.bf16.mxu0 %v924
        %1202 = vmatpush1.bf16.msra.mxu0 %v923
        %1203 = vmatprep.subr.bf16.mxu0 %v926
        %1204 = vmatpush1.bf16.msra.mxu0 %v925
        %1205 = vmatprep.subr.bf16.mxu0 %v928
        %1206 = vmatpush1.bf16.msra.mxu0 %v927
        %1207 = vmatprep.subr.bf16.mxu0 %v930
        %1208 = vmatpush1.bf16.msra.mxu0 %v929
        %1209 = vmatprep.subr.bf16.mxu0 %v932
        %1210 = vmatpush1.bf16.msra.mxu0 %v931
        %1211 = vmatprep.subr.bf16.mxu0 %v934
        %1212 = vmatpush1.bf16.msra.mxu0 %v933
        %1213 = vmatprep.mubr.bf16.mxu0 %v444
        %1214 = vmatmul.mubr.bf16.gmra.mrb[0].mxu0 %v443
        %v1215 = vpop.f32.mrb[0].mxu0
        %v1216 = vadd.f32 %v1173, %v1215
        %v1217 = vpop.f32.mrb[0].mxu0
        %v1218 = vadd.f32 %v1175, %v1217
        %v1219 = vpop.f32.mrb[0].mxu0
        %v1220 = vadd.f32 %v1177, %v1219
        %v1221 = vpop.f32.mrb[0].mxu0
        %v1222 = vadd.f32 %v1179, %v1221
        %1223 = vdwg.mxu0
        %1224 = vmatprep.subr.bf16.mxu0 %v936
        %1225 = vmatpush1.bf16.msra.mxu0 %v935
        %1226 = vmatprep.subr.bf16.mxu0 %v938
        %1227 = vmatpush1.bf16.msra.mxu0 %v937
        %1228 = vmatprep.subr.bf16.mxu0 %v940
        %1229 = vmatpush1.bf16.msra.mxu0 %v939
        %1230 = vmatprep.subr.bf16.mxu0 %v942
        %1231 = vmatpush1.bf16.msra.mxu0 %v941
        %1232 = vmatprep.subr.bf16.mxu0 %v944
        %1233 = vmatpush1.bf16.msra.mxu0 %v943
        %1234 = vmatprep.subr.bf16.mxu0 %v946
        %1235 = vmatpush1.bf16.msra.mxu0 %v945
        %1236 = vmatprep.subr.bf16.mxu0 %v948
        %1237 = vmatpush1.bf16.msra.mxu0 %v947
        %1238 = vmatprep.subr.bf16.mxu0 %v950
        %1239 = vmatpush1.bf16.msra.mxu0 %v949
        %1240 = vmatprep.subr.bf16.mxu0 %v952
        %1241 = vmatpush1.bf16.msra.mxu0 %v951
        %1242 = vmatprep.subr.bf16.mxu0 %v954
        %1243 = vmatpush1.bf16.msra.mxu0 %v953
        %1244 = vmatprep.subr.bf16.mxu0 %v956
        %1245 = vmatpush1.bf16.msra.mxu0 %v955
        %1246 = vmatprep.subr.bf16.mxu0 %v958
        %1247 = vmatpush1.bf16.msra.mxu0 %v957
        %1248 = vmatprep.subr.bf16.mxu0 %v960
        %1249 = vmatpush1.bf16.msra.mxu0 %v959
        %1250 = vmatprep.subr.bf16.mxu0 %v962
        %1251 = vmatpush1.bf16.msra.mxu0 %v961
        %1252 = vmatprep.subr.bf16.mxu0 %v964
        %1253 = vmatpush1.bf16.msra.mxu0 %v963
        %1254 = vmatprep.subr.bf16.mxu0 %v966
        %1255 = vmatpush1.bf16.msra.mxu0 %v965
        %1256 = vmatprep.mubr.bf16.mxu0 %v446
        %1257 = vmatmul.mubr.bf16.gmra.mrb[0].mxu0 %v445
        %v1258 = vpop.f32.mrb[0].mxu0
        %v1259 = vadd.f32 %v1216, %v1258
        %v1260 = vpop.f32.mrb[0].mxu0
        %v1261 = vadd.f32 %v1218, %v1260
        %v1262 = vpop.f32.mrb[0].mxu0
        %v1263 = vadd.f32 %v1220, %v1262
        %v1264 = vpop.f32.mrb[0].mxu0
        %v1265 = vadd.f32 %v1222, %v1264
        %1266 = vdwg.mxu0
        %v1267 = vadd.f32 %v275, %v1259
        %v1268 = vadd.f32 %v276, %v1261
        %v1269 = vadd.f32 %v277, %v1263
        %v1270 = vadd.f32 %v278, %v1265
        %1271 = vst [vmem:[#allocation2] sm:$0xff] %v1267
        %1272 = vst [vmem:[#allocation2 + $0x8] sm:$0xff] %v1268
        %1273 = vst [vmem:[#allocation2 + $0x10] sm:$0xff] %v1269
        %1274 = vst [vmem:[#allocation2 + $0x18] sm:$0xff] %v1270
        // Predicated region
        $region45: #{_forward.1} parent=31 // pred_check
          %p1275 = pneg %p267
        $region46: #{_forward.1} parent=31 // pred_check_branch
          %1277 = sbr.rel (%p1275) target = $region48
        $region47: #{_forward.1} parent=31 // pred_region
          %v1278 = vld [vmem:[#allocation2] sm:$0xff]
          %v1279 = vld [vmem:[#allocation2 + $0x8] sm:$0xff]
          %v1280 = vld [vmem:[#allocation2 + $0x10] sm:$0xff]
          %v1281 = vld [vmem:[#allocation2 + $0x18] sm:$0xff]
          %v1282 = vld [vmem:[%s226] sm:$0xff]
          %v1283 = vld [vmem:[%s226 + $0x8] sm:$0xff]
          %v1284 = vld [vmem:[%s226 + $0x10] sm:$0xff]
          %v1285 = vld [vmem:[%s226 + $0x18] sm:$0xff]
          %v1286 = vld [vmem:[%s226 + $0x20] sm:$0xff]
          %v1287 = vld [vmem:[%s226 + $0x28] sm:$0xff]
          %v1288 = vld [vmem:[%s226 + $0x30] sm:$0xff]
          %v1289 = vld [vmem:[%s226 + $0x38] sm:$0xff]
          %v1290 = vld [vmem:[%s226 + $0x40] sm:$0xff]
          %v1291 = vld [vmem:[%s226 + $0x48] sm:$0xff]
          %v1292 = vld [vmem:[%s226 + $0x50] sm:$0xff]
          %v1293 = vld [vmem:[%s226 + $0x58] sm:$0xff]
          %v1294 = vld [vmem:[%s226 + $0x60] sm:$0xff]
          %v1295 = vld [vmem:[%s226 + $0x68] sm:$0xff]
          %v1296 = vld [vmem:[%s226 + $0x70] sm:$0xff]
          %v1297 = vld [vmem:[%s226 + $0x78] sm:$0xff]
          %v1298 = vld [vmem:[%s226 + $0x80] sm:$0xff]
          %v1299 = vld [vmem:[%s226 + $0x88] sm:$0xff]
          %v1300 = vld [vmem:[%s226 + $0x90] sm:$0xff]
          %v1301 = vld [vmem:[%s226 + $0x98] sm:$0xff]
          %v1302 = vld [vmem:[%s226 + $0xa0] sm:$0xff]
          %v1303 = vld [vmem:[%s226 + $0xa8] sm:$0xff]
          %v1304 = vld [vmem:[%s226 + $0xb0] sm:$0xff]
          %v1305 = vld [vmem:[%s226 + $0xb8] sm:$0xff]
          %v1306 = vld [vmem:[%s226 + $0xc0] sm:$0xff]
          %v1307 = vld [vmem:[%s226 + $0xc8] sm:$0xff]
          %v1308 = vld [vmem:[%s226 + $0xd0] sm:$0xff]
          %v1309 = vld [vmem:[%s226 + $0xd8] sm:$0xff]
          %v1310 = vld [vmem:[%s226 + $0xe0] sm:$0xff]
          %v1311 = vld [vmem:[%s226 + $0xe8] sm:$0xff]
          %v1312 = vld [vmem:[%s226 + $0xf0] sm:$0xff]
          %v1313 = vld [vmem:[%s226 + $0xf8] sm:$0xff]
          %1314 = vmatprep.subr.mxu0 0.0
          %1315 = vmatpush1.msra.mxu0 %v1282
          %1316 = vmatprep.subr.mxu0 0.0
          %1317 = vmatpush1.msra.mxu0 %v1283
          %1318 = vmatprep.subr.mxu0 0.0
          %1319 = vmatpush1.msra.mxu0 %v1284
          %1320 = vmatprep.subr.mxu0 0.0
          %1321 = vmatpush1.msra.mxu0 %v1285
          %1322 = vmatprep.subr.mxu0 0.0
          %1323 = vmatpush1.msra.mxu0 %v1286
          %1324 = vmatprep.subr.mxu0 0.0
          %1325 = vmatpush1.msra.mxu0 %v1287
          %1326 = vmatprep.subr.mxu0 0.0
          %1327 = vmatpush1.msra.mxu0 %v1288
          %1328 = vmatprep.subr.mxu0 0.0
          %1329 = vmatpush1.msra.mxu0 %v1289
          %1330 = vmatprep.subr.mxu0 0.0
          %1331 = vmatpush1.msra.mxu0 %v1290
          %1332 = vmatprep.subr.mxu0 0.0
          %1333 = vmatpush1.msra.mxu0 %v1291
          %1334 = vmatprep.subr.mxu0 0.0
          %1335 = vmatpush1.msra.mxu0 %v1292
          %1336 = vmatprep.subr.mxu0 0.0
          %1337 = vmatpush1.msra.mxu0 %v1293
          %1338 = vmatprep.subr.mxu0 0.0
          %1339 = vmatpush1.msra.mxu0 %v1294
          %1340 = vmatprep.subr.mxu0 0.0
          %1341 = vmatpush1.msra.mxu0 %v1295
          %1342 = vmatprep.subr.mxu0 0.0
          %1343 = vmatpush1.msra.mxu0 %v1296
          %1344 = vmatprep.subr.mxu0 0.0
          %1345 = vmatpush1.msra.mxu0 %v1297
          %1346 = vmatprep.subr.mxu0 0.0
          %1347 = vmatpush1.msra.mxu0 %v1298
          %1348 = vmatprep.subr.mxu0 0.0
          %1349 = vmatpush1.msra.mxu0 %v1299
          %1350 = vmatprep.subr.mxu0 0.0
          %1351 = vmatpush1.msra.mxu0 %v1300
          %1352 = vmatprep.subr.mxu0 0.0
          %1353 = vmatpush1.msra.mxu0 %v1301
          %1354 = vmatprep.subr.mxu0 0.0
          %1355 = vmatpush1.msra.mxu0 %v1302
          %1356 = vmatprep.subr.mxu0 0.0
          %1357 = vmatpush1.msra.mxu0 %v1303
          %1358 = vmatprep.subr.mxu0 0.0
          %1359 = vmatpush1.msra.mxu0 %v1304
          %1360 = vmatprep.subr.mxu0 0.0
          %1361 = vmatpush1.msra.mxu0 %v1305
          %1362 = vmatprep.subr.mxu0 0.0
          %1363 = vmatpush1.msra.mxu0 %v1306
          %1364 = vmatprep.subr.mxu0 0.0
          %1365 = vmatpush1.msra.mxu0 %v1307
          %1366 = vmatprep.subr.mxu0 0.0
          %1367 = vmatpush1.msra.mxu0 %v1308
          %1368 = vmatprep.subr.mxu0 0.0
          %1369 = vmatpush1.msra.mxu0 %v1309
          %1370 = vmatprep.subr.mxu0 0.0
          %1371 = vmatpush1.msra.mxu0 %v1310
          %1372 = vmatprep.subr.mxu0 0.0
          %1373 = vmatpush1.msra.mxu0 %v1311
          %1374 = vmatprep.subr.mxu0 0.0
          %1375 = vmatpush1.msra.mxu0 %v1312
          %1376 = vmatprep.subr.mxu0 0.0
          %1377 = vmatpush1.msra.mxu0 %v1313
          %1378 = vmatprep.mubr.f32.mxu0 %v1279
          %1379 = vmatmul.mubr.f32.gmra.mrb[0].mxu0 %v1278
          %v1380 = vpop.f32.mrb[0].mxu0
          %v1381 = vadd.f32 0.0, %v1380
          %v1382 = vpop.f32.mrb[0].mxu0
          %1383 = vmatprep.mubr.f32.mxu0 %v1281
          %1384 = vmatmul.mubr.f32.gmra.mrb[0].mxu0 %v1280
          %v1385 = vpop.f32.mrb[0].mxu0
          %v1386 = vadd.f32 0.0, %v1385
          %v1387 = vpop.f32.mrb[0].mxu0
          %1388 = vdwg.mxu0
          %1389 = vst [vmem:[%s257] sm:$0xff] %v1381
          %1390 = vst [vmem:[%s257 + $0x8] sm:$0xff] %v1386
        $region48: #{_forward.1} parent=31 // pred_fallthru
          _
        %s1391 = sand.u32 %s120, 1
        %s1392 = sand.u32 %s120, 1
        %s1393 = smul.addr %s1392, 16
        %s1394 = scalar_lea.vmem [#allocation7], %s1393
        // Predicated region
        $region49: #{_forward.1} parent=31 // pred_check
          %p1395 = pneg %p130
        $region50: #{_forward.1} parent=31 // pred_check_branch
          %1397 = sbr.rel (%p1395) target = $region52
        $region51: #{_forward.1} parent=31 // pred_region
          %s1398 = smul.addr %s24, 8
          %s1399 = scalar_lea.vmem %s3, %s1398
          // Predicated region
          $region53: #{_forward.1} parent=51 // pred_check
            _
          $region54: #{_forward.1} parent=51 // pred_check_branch
            %1401 = sbr.rel (0) target = $region56
          $region55: #{_forward.1} parent=51 // pred_region
            // Predicated region
            $region57: #{_forward.1} parent=55 // pred_check
              _
            $region58: #{_forward.1} parent=55 // pred_check_branch
              %1403 = sbr.rel (0) target = $region60
            $region59: #{_forward.1} parent=55 // pred_region
              // Predicated region
              $region72: #{_forward.1} parent=59 // pred_check
                _
              $region73: #{_forward.1} parent=59 // pred_check_branch
                %1420 = sbr.rel (0) target = $region75
              $region74: #{_forward.1} parent=59 // pred_region
                loop: start=0, step=1, limit=1
                $region76: #{_forward.1} parent=74 // loop_pre_header
                  _
                $region77: #{_forward.1} parent=74 // loop_header
                  %s1422 = sphi 0, %s1426
                  %p1423 = scmp.ge.s32.totalorder %s1422, 1
                  %s1427 = sphi %s1394, %s1394
                  %s1428 = sphi %s1399, %s1399
                $region78: #{_forward.1} parent=74 // loop_header_branch
                  %1425 = sbr.rel (%p1423) target = $region82
                $region79: #{_forward.1} parent=74 // loop_body
                  %v1429 = vld [vmem:[%s1427] sm:$0xff]
                  %1430 = vst [vmem:[%s1428] sm:$0xff] %v1429
                  %v1431 = vld [vmem:[%s1427 + $0x8] sm:$0xff]
                  %1432 = vst [vmem:[%s1428 + $0x10] sm:$0xff] %v1431
                $region80: #{_forward.1} parent=74 // loop_footer
                  %s1426 = sadd.s32 1, %s1422
                $region81: #{_forward.1} parent=74 // loop_footer_branch
                  %1421 = sbr.rel target = $region77
                $region82: #{_forward.1} parent=74 // loop_exit
                  _
              $region75: #{_forward.1} parent=59 // pred_fallthru
                _
              // Predicated region
              $region83: #{_forward.1} parent=59 // pred_check
                _
              $region84: #{_forward.1} parent=59 // pred_check_branch
                %1434 = sbr.rel target = $region86
              $region85: #{_forward.1} parent=59 // pred_region
                _
              $region86: #{_forward.1} parent=59 // pred_fallthru
                _
            $region60: #{_forward.1} parent=55 // pred_fallthru
              _
            // Predicated region
            $region61: #{_forward.1} parent=55 // pred_check
              _
            $region62: #{_forward.1} parent=55 // pred_check_branch
              %1405 = sbr.rel target = $region64
            $region63: #{_forward.1} parent=55 // pred_region
              loop: start=0, step=1, limit=1
              $region65: #{_forward.1} parent=63 // loop_pre_header
                _
              $region66: #{_forward.1} parent=63 // loop_header
                %s1408 = sphi 0, %s1412
                %p1409 = scmp.ge.s32.totalorder %s1408, 1
                %s1413 = sphi %s1394, %s1394
                %s1414 = sphi %s1399, %s1399
              $region67: #{_forward.1} parent=63 // loop_header_branch
                %1411 = sbr.rel (%p1409) target = $region71
              $region68: #{_forward.1} parent=63 // loop_body
                %v1415 = vld [vmem:[%s1413] sm:$0xff]
                %1416 = vst [vmem:[%s1414] sm:$0xff] %v1415
                %v1417 = vld [vmem:[%s1413 + $0x8] sm:$0xff]
                %1418 = vst [vmem:[%s1414 + $0x10] sm:$0xff] %v1417
              $region69: #{_forward.1} parent=63 // loop_footer
                %s1412 = sadd.s32 1, %s1408
              $region70: #{_forward.1} parent=63 // loop_footer_branch
                %1407 = sbr.rel target = $region66
              $region71: #{_forward.1} parent=63 // loop_exit
                _
            $region64: #{_forward.1} parent=55 // pred_fallthru
              _
          $region56: #{_forward.1} parent=51 // pred_fallthru
            _
          %1435 = vnop
        $region52: #{_forward.1} parent=31 // pred_fallthru
          _
      $region32: #{_forward.1} parent=5 // pred_fallthru
        _
      %p1436 = scmp.le.s32.totalorder 2, %s15
      // Predicated region
      $region87: #{_forward.1} parent=5 // pred_check
        %p1437 = pneg %p1436
      $region88: #{_forward.1} parent=5 // pred_check_branch
        %1439 = sbr.rel (%p1437) target = $region90
      $region89: #{_forward.1} parent=5 // pred_region
        %s1440 = ssub.s32 %s15, 2
        // Predicated region
        $region91: #{_forward.1} parent=89 // pred_check
          %p1441 = pneg %p136
        $region92: #{_forward.1} parent=89 // pred_check_branch
          %1443 = sbr.rel (%p1441) target = $region94
        $region93: #{_forward.1} parent=89 // pred_region
          %s1444 = sand.u32 %s121, 1
          %s1445 = sand.u32 %s121, 1
          %s1446 = smul.addr %s1445, 16
          %s1447 = scalar_lea.vmem [#allocation7], %s1446
        $region94: #{_forward.1} parent=89 // pred_fallthru
          _
      $region90: #{_forward.1} parent=5 // pred_fallthru
        _
    $region6: #{_forward.1} parent=1 // loop_footer
      %s19 = sadd.s32 1, %s15
    $region7: #{_forward.1} parent=1 // loop_footer_branch
      %14 = sbr.rel target = $region3
    $region8: #{_forward.1} parent=1 // loop_exit
      _
    %1448 = vsyncpa [#allocation4], 1
    %s1449 = scalar_lea.sflag [#allocation4], 1
    %1450 = vsyncpa %s1449, 1
    %1451 = vsyncpa [#allocation6], 1
    %s1452 = scalar_lea.sflag [#allocation6], 1
    %1453 = vsyncpa %s1452, 1

</llo_original>
